<compile_context>
chip_gen: v7x
topology: tpu7x:2x2x1
jax: 0.10.0
libtpu: 0.0.40
codegen_flags: <defaults>
</compile_context>

<pallas_src>
import functools
from dataclasses import dataclass
from typing import Optional

import jax
import jax.numpy as jnp
from jax import lax
from jax.experimental import pallas as pl
from jax.experimental.pallas import tpu as pltpu


# ----------------------------- config ---------------------------------------
@dataclass
class ModelConfig:
    dim: int = 128
    n_layers: int = 2
    n_heads: int = 4
    n_kv_heads: Optional[int] = None
    vocab_size: int = 512
    multiple_of: int = 256
    ffn_dim_multiplier: Optional[float] = None
    norm_eps: float = 1e-5          # NOTE: reference Transformer hardcodes eps=1e-6 for its RMSNorm
    max_batch_size: int = 2
    max_seq_len: int = 16


def precompute_theta_pos_frequencies(head_dim: int, seq_len: int, theta: float = 10000.0):
    assert head_dim % 2 == 0, "Dimension must be divisible by 2"
    theta_numerator = jnp.arange(0, head_dim, 2, dtype=jnp.float32)
    inv = 1.0 / (theta ** (theta_numerator / head_dim))
    m = jnp.arange(seq_len, dtype=jnp.float32)
    freqs = jnp.outer(m, inv)
    # torch.polar(ones, freqs) == cos(freqs) + i*sin(freqs)
    return jnp.cos(freqs) + 1j * jnp.sin(freqs)


# ----------------------------- helpers ---------------------------------------
def _cdiv(a: int, b: int) -> int:
    return -(-a // b)


def _ceil_to(x: int, m: int) -> int:
    return _cdiv(x, m) * m


def _vmem_budget_bytes() -> int:
    """Per-generation VMEM budget: ~3/4 of physical per-TC VMEM.
    v7x (64 MiB physical) -> 48 MiB; v5e/v6e (128 MiB) -> 96 MiB."""
    phys = 128 * 1024 * 1024
    try:
        phys = int(pltpu.get_tpu_info().vmem_capacity_bytes)
    except Exception:
        try:
            kind = jax.devices()[0].device_kind.lower()
            if "v7" in kind:
                phys = 64 * 1024 * 1024
        except Exception:
            pass
    phys = min(max(phys, 64 * 1024 * 1024), 128 * 1024 * 1024)
    return max(16 * 1024 * 1024, (phys * 3) // 4)


def _pick_vocab_tile(dim: int, vocab: int, b_pad: int,
                     w_itemsize: int, x_itemsize: int,
                     vmem_budget_bytes: int):
    """Largest 128-multiple vocab tile TN such that ALL pipeline buffers fit:
         2 x (dim, TN)   weight tile   (double-buffered stream)
         2 x (b_pad, TN) f32 logits    (double-buffered stream)
         2 x (b_pad, dim) activations  (resident, conservatively 2 bufs)
       plus an internal-scratch margin."""
    vocab128 = _ceil_to(vocab, 128)
    fixed = 2 * b_pad * dim * x_itemsize + 2 * 1024 * 1024        # activations + margin
    per_col = 2 * dim * w_itemsize + 2 * b_pad * 4                # weight + f32 out, per vocab column
    tn_cap = (max(vmem_budget_bytes - fixed, 0) // per_col) // 128 * 128
    tn = max(128, min(vocab128, tn_cap))
    n_tiles = _cdiv(vocab128, tn)
    # v7x megacore: when tiling, prefer an even tile count so the two TCs get
    # balanced vocab slices (vocab grid axis is "parallel").
    if n_tiles > 1 and n_tiles % 2 == 1:
        tn_even = max(128, _ceil_to(_cdiv(vocab128, n_tiles + 1), 128))
        if _cdiv(vocab128, tn_even) % 2 == 0:
            tn = tn_even
            n_tiles = _cdiv(vocab128, tn)
    return tn, n_tiles


# ----------------------------- Pallas kernels --------------------------------
def _rmsnorm_kernel(x_ref,       # (B_pad, dim)  gathered embedding rows (bf16)
                    w_ref,       # (1, dim)      RMSNorm weight (f32)
                    out_ref,     # (B_pad, dim)  normalized activations (bf16)
                    *, eps):
    x = x_ref[...].astype(jnp.float32)                       # norm math in f32
    ms = jnp.mean(x * x, axis=-1, keepdims=True)             # (B_pad, 1)
    xn = x * lax.rsqrt(ms + eps) * w_ref[...]                # RMSNorm: weight * norm(x)
    out_ref[...] = xn.astype(out_ref.dtype)


def _logits_matmul_kernel(xn_ref,   # (B_pad, dim)  normalized activations (bf16), resident
                          w_ref,    # (dim, TN)     contiguous tile-major weight slab (bf16)
                          out_ref): # (B_pad, TN)   f32 logits tile
    # bf16 operands on the MXU, f32 accumulation.
    out_ref[...] = jnp.dot(xn_ref[...], w_ref[...],
                           preferred_element_type=jnp.float32)


# ----------------------------- forward ---------------------------------------
def transformer_forward(tokens, params, config: ModelConfig, start_position: int):
    """tokens: (B, 1) int32.  Returns logits (B, 1, vocab) float32."""
    B, S = tokens.shape
    assert S == 1, "The model only supports single token inputs (KV-cache decode)."
    dim, vocab = config.dim, config.vocab_size

    emb = params["tok_embeddings"]                        # (vocab, dim) bf16
    rms_w = params["norm_weight"].reshape(1, dim)         # (1, dim)     f32
    w_tiles = params["output_weight_tiles"]               # (n_tiles, dim, tn) bf16, tile-major
    n_tiles, _, tn = w_tiles.shape
    vocab_pad = n_tiles * tn

    # Computed but unused, matching the reference forward.
    _ = params["freqs_complex"][start_position:start_position + S]

    # Embedding gather in the wrapper (trivial row gather), then pad the batch
    # to 16 sublanes (bf16 packing) so every kernel block is tile-dense.
    x = jnp.take(emb, tokens[:, 0].astype(jnp.int32), axis=0)          # (B, dim)
    b_pad = max(16, _ceil_to(B, 16))
    x_pad = jnp.zeros((b_pad, dim), emb.dtype).at[:B].set(x)           # zero rows stay finite

    # Kernel 1: RMSNorm, computed exactly once (not per vocab tile).
    x_norm = pl.pallas_call(
        functools.partial(_rmsnorm_kernel, eps=1e-6),      # matches RMSNorm(dim, eps=1e-06)
        out_shape=jax.ShapeDtypeStruct((b_pad, dim), emb.dtype),
    )(x_pad, rms_w)

    # Kernel 2: vocab-tiled logits matmul; weight tiles stream as contiguous slabs.
    w_itemsize = jnp.dtype(w_tiles.dtype).itemsize
    x_itemsize = jnp.dtype(x_norm.dtype).itemsize
    vmem_limit = _vmem_budget_bytes()                      # same budget the tile was sized against

    flops = 2 * b_pad * dim * vocab_pad
    bytes_accessed = (n_tiles * dim * tn * w_itemsize      # weight stream (dominant)
                      + b_pad * dim * x_itemsize           # resident activations
                      + b_pad * vocab_pad * 4)             # f32 logits out

    logits_pad = pl.pallas_call(
        _logits_matmul_kernel,
        out_shape=jax.ShapeDtypeStruct((b_pad, vocab_pad), jnp.float32),
        grid=(n_tiles,),
        in_specs=[
            pl.BlockSpec((b_pad, dim), lambda n: (0, 0)),        # resident across vocab tiles
            pl.BlockSpec((None, dim, tn), lambda n: (n, 0, 0)),  # contiguous tile-major weight slab
        ],
        out_specs=pl.BlockSpec((b_pad, tn), lambda n: (0, n)),
        compiler_params=pltpu.CompilerParams(
            dimension_semantics=("parallel",),                   # shard vocab tiles across v7x's 2 TCs
            vmem_limit_bytes=int(vmem_limit)),
        cost_estimate=pl.CostEstimate(flops=flops,
                                      transcendentals=0,
                                      bytes_accessed=bytes_accessed),
    )(x_norm, w_tiles)

    return logits_pad[:B, :vocab].reshape(B, S, vocab)


# ----------------------------- params + reference ---------------------------
def init_params(config: ModelConfig, key, weight_dtype=jnp.bfloat16,
                force_vocab_tile: Optional[int] = None):
    k_emb, k_out = jax.random.split(key)
    head_dim = config.dim // config.n_heads
    emb = jax.random.normal(k_emb, (config.vocab_size, config.dim), jnp.float32) * 0.02
    w_out = jax.random.normal(k_out, (config.vocab_size, config.dim), jnp.float32) * 0.02

    # Tile choice + weight re-layout happen ONCE at init: tile-major
    # (n_tiles, dim, tn), zero-padded over vocab, so every vocab tile is one
    # fully contiguous HBM region (no strided DMA per call, no per-call .T).
    b_pad = max(16, _ceil_to(config.max_batch_size, 16))
    w_itemsize = jnp.dtype(weight_dtype).itemsize
    if force_vocab_tile is not None:
        assert force_vocab_tile % 128 == 0
        tn = force_vocab_tile
        n_tiles = _cdiv(_ceil_to(config.vocab_size, 128), tn)
    else:
        tn, n_tiles = _pick_vocab_tile(config.dim, config.vocab_size, b_pad,
                                       w_itemsize, w_itemsize, _vmem_budget_bytes())
    vocab_pad = n_tiles * tn
    w_t = jnp.zeros((config.dim, vocab_pad), weight_dtype)
    w_t = w_t.at[:, :config.vocab_size].set(w_out.T.astype(weight_dtype))
    w_tiles = jnp.asarray(w_t.reshape(config.dim, n_tiles, tn).transpose(1, 0, 2))

    return {
        "tok_embeddings": emb.astype(weight_dtype),
        "norm_weight": jnp.ones((config.dim,), jnp.float32),
        "output_weight_tiles": w_tiles,                  # (n_tiles, dim, tn) bf16, tile-major
        "freqs_complex": precompute_theta_pos_frequencies(
            head_dim, config.max_seq_len * 2),
    }


def reference_forward(tokens, params, config: ModelConfig):
    # Pure-JAX reference of the (runnable part of the) PyTorch forward, with the
    # same dtype flow as the kernels (bf16 weights, f32 norm + accumulation).
    x = jnp.take(params["tok_embeddings"], tokens[:, 0], axis=0)        # (B, dim) bf16
    xf = x.astype(jnp.float32)
    ms = jnp.mean(xf * xf, axis=-1, keepdims=True)
    xn = xf * lax.rsqrt(ms + 1e-6) * params["norm_weight"].astype(jnp.float32)
    w_tiles = params["output_weight_tiles"]                             # (n_tiles, dim, tn)
    n_tiles, dim, tn = w_tiles.shape
    w_t = w_tiles.transpose(1, 0, 2).reshape(dim, n_tiles * tn)[:, :config.vocab_size]
    logits = jnp.dot(xn.astype(w_t.dtype), w_t, preferred_element_type=jnp.float32)
    return logits.reshape(tokens.shape[0], 1, config.vocab_size)


# ----------------------------- main ------------------------------------------
if __name__ == "__main__":
    cfg = ModelConfig(dim=128, n_layers=2, n_heads=4, vocab_size=512,
                      max_batch_size=2, max_seq_len=16)

    root = jax.random.PRNGKey(0)
    k_params, k_tok = jax.random.split(root)
    tokens = jax.random.randint(k_tok, (cfg.max_batch_size, 1), 0, cfg.vocab_size,
                                dtype=jnp.int32)
    start_position = 0

    # Default path: whole padded weight fits the VMEM budget -> grid=(1,),
    # single step, no pipelining overhead at toy vocab.
    params = init_params(cfg, k_params)
    out = jax.block_until_ready(transformer_forward(tokens, params, cfg, start_position))
    ref = reference_forward(tokens, params, cfg)
    assert out.shape == (cfg.max_batch_size, 1, cfg.vocab_size), out.shape
    assert out.dtype == jnp.float32, out.dtype
    assert jnp.allclose(out, ref, atol=2e-2, rtol=2e-2), "mismatch vs reference (grid=1 path)"

    # Tiled-weight-stream path (forced 128-wide tiles -> grid=(4,)) to validate
    # the multi-tile grid + contiguous tile-major weight DMA used at real vocab sizes.
    params_tiled = init_params(cfg, k_params, force_vocab_tile=128)
    out_t = jax.block_until_ready(transformer_forward(tokens, params_tiled, cfg, start_position))
    ref_t = reference_forward(tokens, params_tiled, cfg)
    assert jnp.allclose(out_t, ref_t, atol=2e-2, rtol=2e-2), "mismatch vs reference (tiled path)"

    print("KERNEL_OK")
</pallas_src>

<mosaic_0001>
module attributes {stable_mosaic.version = 11 : i64} {
  func.func @_rmsnorm_kernel(%arg0: memref<16x128xbf16, #tpu.memory_space<vmem>>, %arg1: memref<1x128xf32, #tpu.memory_space<vmem>>, %arg2: memref<16x128xbf16, #tpu.memory_space<vmem>>) attributes {dimension_semantics = [], scalar_prefetch = 0 : i64, scratch_operands = 0 : i64, tpu.core_type = #tpu.core_type<tc>} {
    %c0 = arith.constant 0 : index
    %c0_0 = arith.constant 0 : index
    %0 = vector.load %arg0[%c0, %c0_0] : memref<16x128xbf16, #tpu.memory_space<vmem>>, vector<16x128xbf16>
    %1 = arith.extf %0 : vector<16x128xbf16> to vector<16x128xf32>
    %2 = arith.mulf %1, %1 : vector<16x128xf32>
    %cst = arith.constant dense<0.000000e+00> : vector<16xf32>
    %3 = vector.multi_reduction <add>, %2, %cst [1] : vector<16x128xf32> to vector<16xf32>
    %4 = vector.shape_cast %3 : vector<16xf32> to vector<16x1xf32>
    %cst_1 = arith.constant 1.280000e+02 : f32
    %5 = vector.broadcast %cst_1 : f32 to vector<16x1xf32>
    %6 = arith.divf %4, %5 : vector<16x1xf32>
    %cst_2 = arith.constant 9.99999997E-7 : f32
    %7 = vector.broadcast %cst_2 : f32 to vector<16x1xf32>
    %8 = arith.addf %6, %7 : vector<16x1xf32>
    %9 = math.rsqrt %8 : vector<16x1xf32>
    %10 = vector.broadcast %9 : vector<16x1xf32> to vector<16x128xf32>
    %11 = arith.mulf %1, %10 : vector<16x128xf32>
    %c0_3 = arith.constant 0 : index
    %c0_4 = arith.constant 0 : index
    %12 = vector.load %arg1[%c0_3, %c0_4] : memref<1x128xf32, #tpu.memory_space<vmem>>, vector<1x128xf32>
    %13 = vector.broadcast %12 : vector<1x128xf32> to vector<16x128xf32>
    %14 = arith.mulf %11, %13 : vector<16x128xf32>
    %15 = arith.truncf %14 : vector<16x128xf32> to vector<16x128xbf16>
    %c0_5 = arith.constant 0 : index
    %c0_6 = arith.constant 0 : index
    %16 = vector.load %arg2[%c0_5, %c0_6] : memref<16x128xbf16, #tpu.memory_space<vmem>>, vector<16x128xbf16>
    tpu.vector_store %arg2[%c0_5, %c0_6], %15 {strides = array<i32>} : memref<16x128xbf16, #tpu.memory_space<vmem>>, vector<16x128xbf16>,
    return
  }
}

</mosaic_0001>

<llo_original>
// kernel: tpu_custom_call.1
$region0: #{tpu_custom_call.1}
  #allocation0 [shape = 'u32[]', space=smem, size = 0x4, offset = 0x4, fixed_abs, tag = 'smem constant byte address 0x4 - core index']
  #allocation1 [shape = 'u32[144,128]{1,0:T(1,128)}', space=vmem, size = 0x12000, scoped, tag = 'internal scratch']
  %s0 = inlined_call_operand.hbm [shape: bf16[16,128], index: 0, kind: input, shape index: {}]
  %s1 = inlined_call_operand.vmem [shape: f32[1,128], index: 1, kind: input, shape index: {}]
  %s2 = inlined_call_operand.hbm [shape: bf16[16,128], index: 2, kind: output, shape index: {}]
  %s3 = sld [smem:[#allocation0]]
  $region22: #{tpu_custom_call.1} parent=0
    _
  %s5 = ssub.s32 1, %s3
  %s6 = scalar_select 0, %s5, %s3
  $region1: #{tpu_custom_call.1} parent=0
    #allocation2 [shape = 'u8[4096]{0}', space=vmem, size = 0x1000, scoped, tag = 'input window, operand 0, single buffered']
    #allocation3 [shape = 's32[1]{0}', space=sflag, size = 0x4, scoped, tag = 'scoped memory for tpu_custom_call.1']
    #allocation4 [shape = 's32[1]{0}', space=sflag, size = 0x4, scoped, tag = 'scoped memory for tpu_custom_call.1']
    #allocation5 [shape = 'u8[4096]{0}', space=vmem, size = 0x1000, scoped, tag = 'output window, operand 0, single buffered']
    %7 = vsyncpa [#allocation3], 0
    %8 = vsyncpa [#allocation4], 0
    // Predicated region
    $region2: #{tpu_custom_call.1} parent=1 // pred_check
      _
    $region3: #{tpu_custom_call.1} parent=1 // pred_check_branch
      %10 = sbr.rel (0) target = $region5
    $region4: #{tpu_custom_call.1} parent=1 // pred_region
      %s12 = ssub.s32 128, 128
      %13 = vsyncadd [#allocation3], %s12
      %s14 = sshll.u32 [#allocation2], 4
      %s15 = int_to_ptr.vmem [resolvable:$true] %s14
      %20 = dma.hbm_to_vmem [thread:$0]  %s0, 128, %s15, [#allocation3], 64, 64, 4
    $region5: #{tpu_custom_call.1} parent=1 // pred_fallthru
      _
    // Predicated region
    $region6: #{tpu_custom_call.1} parent=1 // pred_check
      _
    $region7: #{tpu_custom_call.1} parent=1 // pred_check_branch
      %22 = sbr.rel (0) target = $region9
    $region8: #{tpu_custom_call.1} parent=1 // pred_region
      _
    $region9: #{tpu_custom_call.1} parent=1 // pred_fallthru
      _
    // Predicated region
    $region10: #{tpu_custom_call.1} parent=1 // pred_check
      _
    $region11: #{tpu_custom_call.1} parent=1 // pred_check_branch
      %24 = sbr.rel (0) target = $region13
    $region12: #{tpu_custom_call.1} parent=1 // pred_region
      %25 = dma.done [#allocation3], 128
    $region13: #{tpu_custom_call.1} parent=1 // pred_fallthru
      _
    %v26 = vld [vmem:[#allocation2] sm:$0xf]
    %v27 = vld [vmem:[#allocation2 + $0x4] sm:$0xf]
    %v28 = vunpack.c.l.bf16 %v26
    %v29 = vunpack.c.l.bf16 %v27
    %v30 = vmul.f32 %v28, %v28
    %v31 = vmul.f32 %v29, %v29
    %32 = vadd.xlane.f32.xlu0 %v30
    %v33 = vpop.xlane.xlu0 %32
    %34 = vadd.xlane.f32.xlu0 %v31
    %v35 = vpop.xlane.xlu0 %34
    %v36 = vrcp.pop 128.0
    %v37 = vmul.f32 %v33, %v36
    %v38 = vmul.f32 %v35, %v36
    %v39 = vadd.f32 %v37, 1e-06
    %v40 = vadd.f32 %v38, 1e-06
    %v41 = vrsqrt.pop %v39
    %v42 = vrsqrt.pop %v40
    %v43 = vmul.f32 %v28, %v41
    %v44 = vmul.f32 %v29, %v42
    %v45 = vld [vmem:[%s1] sm:$0x1]
    %v47 = vlaneseq
    %v48 = vshrl.u32 %v47, 7
    %v49 = vsub.s32 0, %v48
    %v50 = vrot.slane %v45, %v49
    %v52 = vmul.f32 %v43, %v50
    %v53 = vmul.f32 %v44, %v50
    %v54 = vpack.c.bf16 %v53, %v52
    %v56 = vunpack.c.l.b16 %v54
    %v57 = vunpack.c.h.b16 %v54
    %v58 = vpack.c.b16 %v56, %v56
    %v59 = vpack.c.b16 %v57, %v57
    %62 = vst [vmem:[#allocation5] sm:$0xf] %v58
    %63 = vst [vmem:[#allocation5 + $0x4] sm:$0xf] %v59
    // Predicated region
    $region14: #{tpu_custom_call.1} parent=1 // pred_check
      _
    $region15: #{tpu_custom_call.1} parent=1 // pred_check_branch
      %65 = sbr.rel (0) target = $region17
    $region16: #{tpu_custom_call.1} parent=1 // pred_region
      %s67 = ssub.s32 128, 128
      %68 = vsyncadd [#allocation4], %s67
      %s69 = sshll.u32 [#allocation5], 4
      %s70 = int_to_ptr.vmem [resolvable:$true] %s69
      %75 = dma.vmem_to_hbm [thread:$0]  %s70, 128, %s2, [#allocation4], 64, 64, 4
    $region17: #{tpu_custom_call.1} parent=1 // pred_fallthru
      _
    // Predicated region
    $region18: #{tpu_custom_call.1} parent=1 // pred_check
      _
    $region19: #{tpu_custom_call.1} parent=1 // pred_check_branch
      %77 = sbr.rel (0) target = $region21
    $region20: #{tpu_custom_call.1} parent=1 // pred_region
      %78 = dma.done [#allocation4], 128
    $region21: #{tpu_custom_call.1} parent=1 // pred_fallthru
      _
    %79 = vsyncpa [#allocation3], 1
    %80 = vsyncpa [#allocation4], 1

</llo_original>
